<compile_context>
chip_gen: v7x
topology: tpu7x:2x2x1
jax: 0.10.0
libtpu: 0.0.40
codegen_flags: <defaults>
</compile_context>

<pallas_src>
import functools

import jax
import jax.numpy as jnp
from jax import lax
from jax.experimental import pallas as pl
from jax.experimental.pallas import tpu as pltpu

IN_FEATURES = 11
LANE = 128


def _round_up(n, m):
    return ((n + m - 1) // m) * m


def _mlp_kernel(depth, ch, *refs):
    """One batch tile of the MLP.

    refs = (x_ref, w0t_ref, b0_ref, [wh_ref, bh_ref,] wl_ref, bl_ref, out_ref)
      x_ref  : [tb, 11]          natural HBM layout (batch on sublanes)
      w0t_ref: [11, Hp0]         layer-0 weight, pre-transposed, cols 0-padded to 128-mult
      b0_ref : [H, 1]
      wh_ref : [depth, H, H]     stacked hidden weights (torch [out, in] layout)
      bh_ref : [depth, H, 1]
      wl_ref : [1, H]
      bl_ref : [1, 1]
      out_ref: [n_chunks, 1, ch] chunk-major output (batch on lanes per chunk)
    """
    if depth > 0:
        (x_ref, w0t_ref, b0_ref, wh_ref, bh_ref, wl_ref, bl_ref, out_ref) = refs
    else:
        (x_ref, w0t_ref, b0_ref, wl_ref, bl_ref, out_ref) = refs
        wh_ref = bh_ref = None

    hdim = b0_ref.shape[0]
    n_chunks = out_ref.shape[0]
    n_pieces = ch // LANE

    def chunk_body(c, carry):
        base = pl.multiple_of(c * ch, ch)

        # ---- Layer 0: [batch, feat] matmul + XLU transpose to [feat, batch].
        # Done per 128-row piece so each transpose is a canonical 128-aligned
        # block and vreg pressure stays low.
        w0t = w0t_ref[...]
        pieces = []
        for j in range(n_pieces):
            row = pl.multiple_of(base + j * LANE, LANE)
            xj = x_ref[pl.ds(row, LANE), :]                         # [128, 11]
            zj = jnp.dot(xj.astype(w0t.dtype), w0t,
                         preferred_element_type=jnp.float32)        # [128, Hp0]
            pieces.append(zj.T[:hdim, :])                           # [H, 128]
        h = pieces[0] if n_pieces == 1 else jnp.concatenate(pieces, axis=1)
        h = h + b0_ref[...]                                         # [H, ch]

        # ---- Hidden layers: Linear(H, H) -> ReLU, batch on lanes (lane-dense).
        for d in range(depth):
            w = wh_ref[d]                                           # [H, H]
            h = jnp.dot(w, h.astype(w.dtype),
                        preferred_element_type=jnp.float32) + bh_ref[d]
            h = jnp.maximum(h, 0.0)

        # ---- Output layer: Linear(H, 1), no activation.
        wl = wl_ref[...]                                            # [1, H]
        y = jnp.dot(wl, h.astype(wl.dtype),
                    preferred_element_type=jnp.float32) + bl_ref[...]   # [1, ch]

        out_ref[c] = y.astype(out_ref.dtype)                        # lane-dense store
        return carry

    # fori_loop (not a static Python for) bounds per-chunk live ranges;
    # unroll=2 overlaps two independent chains (MRF latency on v5e/v6e).
    lax.fori_loop(0, n_chunks, chunk_body, 0, unroll=min(2, n_chunks))


def make_net_params(key, hidden_layer_width, model_depth):
    """torch.nn.Linear-style init: W [out, in], b [out], U(-1/sqrt(fan_in), +)."""
    dims = [IN_FEATURES] + [hidden_layer_width] * (model_depth + 1) + [1]
    params = []
    for i in range(len(dims) - 1):
        fan_in, fan_out = dims[i], dims[i + 1]
        key, kw, kb = jax.random.split(key, 3)
        bound = 1.0 / (fan_in ** 0.5)
        w = jax.random.uniform(kw, (fan_out, fan_in), jnp.float32, -bound, bound)
        b = jax.random.uniform(kb, (fan_out,), jnp.float32, -bound, bound)
        params.append((w, b))
    return params


def net_forward(x, params, model_depth, *, batch_tile=2048, use_bf16=False):
    """Full MLP forward as one batch-tiled Pallas kernel.  x: [B, 11] -> [B, 1]."""
    B, fin = x.shape
    assert fin == IN_FEATURES
    assert len(params) == model_depth + 2

    hdim = params[0][0].shape[0]
    param_dtype = jnp.bfloat16 if use_bf16 else jnp.float32

    # ---- batch tiling -------------------------------------------------------
    b_pad = _round_up(B, LANE)
    # v7x megacore: prefer >= 2 grid steps so both TensorCores get work.
    half = max(LANE, (b_pad // (2 * LANE)) * LANE)
    tb = min(batch_tile, half)
    b_pad = _round_up(b_pad, tb)
    grid = (b_pad // tb,)
    # in-kernel sub-chunk width (lanes): bounds vreg live ranges at large tb.
    ch = 512 if tb % 512 == 0 else (256 if tb % 256 == 0 else LANE)
    n_chunks = tb // ch

    # No host-side transpose of x; only pad the batch dim when needed.
    x_in = jnp.pad(x, ((0, b_pad - B), (0, 0))) if b_pad != B else x

    # ---- parameters (VMEM-resident via constant index_maps) ----------------
    (w0, b0) = params[0]
    (wl, bl) = params[-1]
    hidden = params[1:-1]

    hp0 = _round_up(hdim, LANE)  # pad layer-0 output cols -> canonical transpose
    w0t = jnp.zeros((fin, hp0), param_dtype).at[:, :hdim].set(
        w0.T.astype(param_dtype))
    b0c = b0.reshape(hdim, 1).astype(jnp.float32)

    operands = [x_in, w0t, b0c]
    in_specs = [
        pl.BlockSpec((tb, fin), lambda i: (i, 0)),
        pl.BlockSpec((fin, hp0), lambda i: (0, 0)),
        pl.BlockSpec((hdim, 1), lambda i: (0, 0)),
    ]
    if model_depth > 0:
        wh = jnp.stack([w.astype(param_dtype) for (w, _) in hidden])
        bh = jnp.stack([b.reshape(hdim, 1).astype(jnp.float32) for (_, b) in hidden])
        operands += [wh, bh]
        in_specs += [
            pl.BlockSpec((model_depth, hdim, hdim), lambda i: (0, 0, 0)),
            pl.BlockSpec((model_depth, hdim, 1), lambda i: (0, 0, 0)),
        ]
    operands += [wl.astype(param_dtype), bl.reshape(1, 1).astype(jnp.float32)]
    in_specs += [
        pl.BlockSpec((1, hdim), lambda i: (0, 0)),
        pl.BlockSpec((1, 1), lambda i: (0, 0)),
    ]

    out_shape = jax.ShapeDtypeStruct((b_pad // ch, 1, ch), jnp.float32)
    out_spec = pl.BlockSpec((n_chunks, 1, ch), lambda i: (i, 0, 0))

    kernel = functools.partial(_mlp_kernel, model_depth, ch)

    out3 = pl.pallas_call(
        kernel,
        out_shape=out_shape,
        grid_spec=pltpu.PrefetchScalarGridSpec(
            num_scalar_prefetch=0,
            grid=grid,
            in_specs=in_specs,
            out_specs=out_spec,
        ),
        compiler_params=pltpu.CompilerParams(
            dimension_semantics=("parallel",),
        ),
    )(*operands)

    # Chunk-major -> flat batch order; output is tiny so this reshape is free.
    return out3.reshape(-1)[:B].reshape(B, 1).astype(x.dtype)


if __name__ == "__main__":
    config = {"hidden_layer_width": 32, "model_depth": 2}
    batch = 8

    key = jax.random.PRNGKey(0)
    key, kx = jax.random.split(key)
    x = jax.random.normal(kx, (batch, IN_FEATURES), dtype=jnp.float32)

    params = make_net_params(key, config["hidden_layer_width"],
                             config["model_depth"])

    out = net_forward(x, params, config["model_depth"])
    out = jax.block_until_ready(out)

    # Plain-JAX reference matching torch Net:
    #   Linear(11,H) -> [Linear(H,H) -> ReLU]*depth -> Linear(H,1)
    h = x
    n_layers = config["model_depth"] + 2
    for i, (w, b) in enumerate(params):
        h = h @ w.T + b
        if 0 < i < n_layers - 1:
            h = jnp.maximum(h, 0.0)

    assert out.shape == (batch, 1)
    assert jnp.allclose(out, h, atol=1e-5, rtol=1e-5)

    print("KERNEL_OK")
</pallas_src>

<mosaic_0001>
module attributes {stable_mosaic.version = 11 : i64} {
  func.func @_mlp_kernel(%arg0: i32, %arg1: memref<128x11xf32, #tpu.memory_space<vmem>>, %arg2: memref<11x128xf32, #tpu.memory_space<vmem>>, %arg3: memref<32x1xf32, #tpu.memory_space<vmem>>, %arg4: memref<2x32x32xf32, #tpu.memory_space<vmem>>, %arg5: memref<2x32x1xf32, #tpu.memory_space<vmem>>, %arg6: memref<1x32xf32, #tpu.memory_space<vmem>>, %arg7: memref<1x1xf32, #tpu.memory_space<vmem>>, %arg8: memref<1x1x128xf32, #tpu.memory_space<vmem>>) attributes {dimension_semantics = [#tpu.dimension_semantics<parallel>], iteration_bounds = array<i64: 1>, scalar_prefetch = 0 : i64, scratch_operands = 0 : i64, tpu.core_type = #tpu.core_type<tc>, window_params = [{transform_indices = @transform_0, window_bounds = array<i64: 128, 11>}, {pipeline_mode = #tpu.pipeline_mode<synchronous>, transform_indices = @transform_1, window_bounds = array<i64: 11, 128>}, {pipeline_mode = #tpu.pipeline_mode<synchronous>, transform_indices = @transform_2, window_bounds = array<i64: 32, 1>}, {pipeline_mode = #tpu.pipeline_mode<synchronous>, transform_indices = @transform_3, window_bounds = array<i64: 2, 32, 32>}, {pipeline_mode = #tpu.pipeline_mode<synchronous>, transform_indices = @transform_4, window_bounds = array<i64: 2, 32, 1>}, {pipeline_mode = #tpu.pipeline_mode<synchronous>, transform_indices = @transform_5, window_bounds = array<i64: 1, 32>}, {pipeline_mode = #tpu.pipeline_mode<synchronous>, transform_indices = @transform_6, window_bounds = array<i64: 1, 1>}, {transform_indices = @transform_7, window_bounds = array<i64: 1, 1, 128>}]} {
    %c0_i32 = arith.constant 0 : i32
    %c128_i32 = arith.constant 128 : i32
    %0 = arith.muli %c0_i32, %c128_i32 : i32
    %1 = tpu.assume_multiple %0, 128 : i32
    %c0 = arith.constant 0 : index
    %c0_0 = arith.constant 0 : index
    %2 = vector.load %arg2[%c0, %c0_0] : memref<11x128xf32, #tpu.memory_space<vmem>>, vector<11x128xf32>
    %c0_i32_1 = arith.constant 0 : i32
    %3 = arith.addi %1, %c0_i32_1 : i32
    %4 = tpu.assume_multiple %3, 128 : i32
    %5 = arith.index_cast %4 : i32 to index
    %c0_2 = arith.constant 0 : index
    %6 = vector.load %arg1[%5, %c0_2] : memref<128x11xf32, #tpu.memory_space<vmem>>, vector<128x11xf32>
    %cst = arith.constant dense<0.000000e+00> : vector<128x128xf32>
    %7 = tpu.matmul %6, %2, %cst {dimension_numbers = #tpu.dot_dimension_numbers<[1], [0], [0], [1], [0, 0, 1, 1], [], []>} : vector<128x11xf32>, vector<11x128xf32>, vector<128x128xf32> -> vector<128x128xf32>
    %8 = tpu.transpose %7, [1, 0] : vector<128x128xf32> -> vector<128x128xf32>
    %9 = vector.extract_strided_slice %8 {offsets = [0, 0], sizes = [32, 128], strides = [1, 1]} : vector<128x128xf32> to vector<32x128xf32>
    %c0_3 = arith.constant 0 : index
    %c0_4 = arith.constant 0 : index
    %10 = vector.load %arg3[%c0_3, %c0_4] : memref<32x1xf32, #tpu.memory_space<vmem>>, vector<32x1xf32>
    %11 = vector.broadcast %10 : vector<32x1xf32> to vector<32x128xf32>
    %12 = arith.addf %9, %11 : vector<32x128xf32>
    %c0_5 = arith.constant 0 : index
    %c0_6 = arith.constant 0 : index
    %c0_7 = arith.constant 0 : index
    %13 = vector.load %arg4[%c0_5, %c0_6, %c0_7] : memref<2x32x32xf32, #tpu.memory_space<vmem>>, vector<1x32x32xf32>
    %14 = vector.shape_cast %13 : vector<1x32x32xf32> to vector<32x32xf32>
    %cst_8 = arith.constant dense<0.000000e+00> : vector<32x128xf32>
    %15 = tpu.matmul %14, %12, %cst_8 {dimension_numbers = #tpu.dot_dimension_numbers<[1], [0], [0], [1], [0, 0, 1, 1], [], []>} : vector<32x32xf32>, vector<32x128xf32>, vector<32x128xf32> -> vector<32x128xf32>
    %c0_9 = arith.constant 0 : index
    %c0_10 = arith.constant 0 : index
    %c0_11 = arith.constant 0 : index
    %16 = vector.load %arg5[%c0_9, %c0_10, %c0_11] : memref<2x32x1xf32, #tpu.memory_space<vmem>>, vector<1x32x1xf32>
    %17 = vector.shape_cast %16 : vector<1x32x1xf32> to vector<32x1xf32>
    %18 = vector.broadcast %17 : vector<32x1xf32> to vector<32x128xf32>
    %19 = arith.addf %15, %18 : vector<32x128xf32>
    %cst_12 = arith.constant 0.000000e+00 : f32
    %20 = vector.broadcast %cst_12 : f32 to vector<32x128xf32>
    %21 = arith.maximumf %19, %20 : vector<32x128xf32>
    %c1 = arith.constant 1 : index
    %c0_13 = arith.constant 0 : index
    %c0_14 = arith.constant 0 : index
    %22 = vector.load %arg4[%c1, %c0_13, %c0_14] : memref<2x32x32xf32, #tpu.memory_space<vmem>>, vector<1x32x32xf32>
    %23 = vector.shape_cast %22 : vector<1x32x32xf32> to vector<32x32xf32>
    %cst_15 = arith.constant dense<0.000000e+00> : vector<32x128xf32>
    %24 = tpu.matmul %23, %21, %cst_15 {dimension_numbers = #tpu.dot_dimension_numbers<[1], [0], [0], [1], [0, 0, 1, 1], [], []>} : vector<32x32xf32>, vector<32x128xf32>, vector<32x128xf32> -> vector<32x128xf32>
    %c1_16 = arith.constant 1 : index
    %c0_17 = arith.constant 0 : index
    %c0_18 = arith.constant 0 : index
    %25 = vector.load %arg5[%c1_16, %c0_17, %c0_18] : memref<2x32x1xf32, #tpu.memory_space<vmem>>, vector<1x32x1xf32>
    %26 = vector.shape_cast %25 : vector<1x32x1xf32> to vector<32x1xf32>
    %27 = vector.broadcast %26 : vector<32x1xf32> to vector<32x128xf32>
    %28 = arith.addf %24, %27 : vector<32x128xf32>
    %cst_19 = arith.constant 0.000000e+00 : f32
    %29 = vector.broadcast %cst_19 : f32 to vector<32x128xf32>
    %30 = arith.maximumf %28, %29 : vector<32x128xf32>
    %c0_20 = arith.constant 0 : index
    %c0_21 = arith.constant 0 : index
    %31 = vector.load %arg6[%c0_20, %c0_21] : memref<1x32xf32, #tpu.memory_space<vmem>>, vector<1x32xf32>
    %cst_22 = arith.constant dense<0.000000e+00> : vector<1x128xf32>
    %32 = tpu.matmul %31, %30, %cst_22 {dimension_numbers = #tpu.dot_dimension_numbers<[1], [0], [0], [1], [0, 0, 1, 1], [], []>} : vector<1x32xf32>, vector<32x128xf32>, vector<1x128xf32> -> vector<1x128xf32>
    %c0_23 = arith.constant 0 : index
    %c0_24 = arith.constant 0 : index
    %33 = vector.load %arg7[%c0_23, %c0_24] : memref<1x1xf32, #tpu.memory_space<vmem>>, vector<1x1xf32>
    %34 = vector.broadcast %33 : vector<1x1xf32> to vector<1x128xf32>
    %35 = arith.addf %32, %34 : vector<1x128xf32>
    %36 = arith.index_cast %c0_i32 : i32 to index
    %c0_25 = arith.constant 0 : index
    %c0_26 = arith.constant 0 : index
    %37 = vector.load %arg8[%36, %c0_25, %c0_26] : memref<1x1x128xf32, #tpu.memory_space<vmem>>, vector<1x1x128xf32>
    %38 = vector.shape_cast %37 : vector<1x1x128xf32> to vector<1x128xf32>
    %39 = vector.shape_cast %35 : vector<1x128xf32> to vector<1x1x128xf32>
    tpu.vector_store %arg8[%36, %c0_25, %c0_26], %39 {strides = array<i32>} : memref<1x1x128xf32, #tpu.memory_space<vmem>>, vector<1x1x128xf32>,
    %c1_i32 = arith.constant 1 : i32
    return
  }
  func.func @transform_0(%arg0: i32) -> (i32, i32) {
    %c0_i32 = arith.constant 0 : i32
    %c0_i32_0 = arith.constant 0 : i32
    return %arg0, %c0_i32 : i32, i32
  }
  func.func @transform_1(%arg0: i32) -> (i32, i32) {
    %c0_i32 = arith.constant 0 : i32
    %c0_i32_0 = arith.constant 0 : i32
    %c0_i32_1 = arith.constant 0 : i32
    return %c0_i32, %c0_i32_0 : i32, i32
  }
  func.func @transform_2(%arg0: i32) -> (i32, i32) {
    %c0_i32 = arith.constant 0 : i32
    %c0_i32_0 = arith.constant 0 : i32
    %c0_i32_1 = arith.constant 0 : i32
    return %c0_i32, %c0_i32_0 : i32, i32
  }
  func.func @transform_3(%arg0: i32) -> (i32, i32, i32) {
    %c0_i32 = arith.constant 0 : i32
    %c0_i32_0 = arith.constant 0 : i32
    %c0_i32_1 = arith.constant 0 : i32
    %c0_i32_2 = arith.constant 0 : i32
    return %c0_i32, %c0_i32_0, %c0_i32_1 : i32, i32, i32
  }
  func.func @transform_4(%arg0: i32) -> (i32, i32, i32) {
    %c0_i32 = arith.constant 0 : i32
    %c0_i32_0 = arith.constant 0 : i32
    %c0_i32_1 = arith.constant 0 : i32
    %c0_i32_2 = arith.constant 0 : i32
    return %c0_i32, %c0_i32_0, %c0_i32_1 : i32, i32, i32
  }
  func.func @transform_5(%arg0: i32) -> (i32, i32) {
    %c0_i32 = arith.constant 0 : i32
    %c0_i32_0 = arith.constant 0 : i32
    %c0_i32_1 = arith.constant 0 : i32
    return %c0_i32, %c0_i32_0 : i32, i32
  }
  func.func @transform_6(%arg0: i32) -> (i32, i32) {
    %c0_i32 = arith.constant 0 : i32
    %c0_i32_0 = arith.constant 0 : i32
    %c0_i32_1 = arith.constant 0 : i32
    return %c0_i32, %c0_i32_0 : i32, i32
  }
  func.func @transform_7(%arg0: i32) -> (i32, i32, i32) {
    %c0_i32 = arith.constant 0 : i32
    %c0_i32_0 = arith.constant 0 : i32
    %c0_i32_1 = arith.constant 0 : i32
    return %arg0, %c0_i32, %c0_i32_0 : i32, i32, i32
  }
}

</mosaic_0001>

<llo_original>
// kernel: tpu_custom_call.1
$region0: #{tpu_custom_call.1}
  #allocation0 [shape = 'u32[]', space=smem, size = 0x4, offset = 0x4, fixed_abs, tag = 'smem constant byte address 0x4 - core index']
  #allocation1 [shape = 'u32[144,128]{1,0:T(1,128)}', space=vmem, size = 0x12000, scoped, tag = 'internal scratch']
  #allocation2 [shape = 'f32[1,1]{1,0:T(1,128)S(1)}', space=vmem, size = 0x200, scoped, tag = 'scoped memory for tpu_custom_call.1']
  %s0 = inlined_call_operand.vmem [shape: f32[128,11], index: 0, kind: input, shape index: {}]
  %s1 = inlined_call_operand.vmem [shape: f32[11,128], index: 1, kind: input, shape index: {}]
  %s2 = inlined_call_operand.vmem [shape: f32[32,1], index: 2, kind: input, shape index: {}]
  %s3 = inlined_call_operand.vmem [shape: f32[2,32,32], index: 3, kind: input, shape index: {}]
  %s4 = inlined_call_operand.vmem [shape: f32[2,32,1], index: 4, kind: input, shape index: {}]
  %s5 = inlined_call_operand.vmem [shape: f32[1,32], index: 5, kind: input, shape index: {}]
  %s6 = inlined_call_operand.<no memory space> [shape: f32[1,1], index: 6, kind: input, shape index: {}]
  %s7 = inlined_call_operand.hbm [shape: f32[1,1,128], index: 7, kind: output, shape index: {}]
  %s8 = sld [smem:[#allocation0]]
  $region38: #{tpu_custom_call.1} parent=0
    _
  %s10 = ssub.s32 1, %s8
  %s11 = scalar_select 0, %s10, %s8
  %v12 = vstv %s6
  %13 = vst [vmem:[#allocation2] sm:$0x1] %v12
  $region1: #{tpu_custom_call.1} parent=0
    #allocation3 [shape = 'u8[512]{0}', space=vmem, size = 0x400, scoped, tag = 'output window, operand 0, single buffered']
    #allocation4 [shape = 's32[1]{0}', space=sflag, size = 0x4, scoped, tag = 'scoped memory for tpu_custom_call.1']
    %14 = vsyncpa [#allocation4], 0
    // Predicated region
    $region2: #{tpu_custom_call.1} parent=1 // pred_check
      _
    $region3: #{tpu_custom_call.1} parent=1 // pred_check_branch
      %16 = sbr.rel (0) target = $region5
    $region4: #{tpu_custom_call.1} parent=1 // pred_region
      _
    $region5: #{tpu_custom_call.1} parent=1 // pred_fallthru
      _
    // Predicated region
    $region6: #{tpu_custom_call.1} parent=1 // pred_check
      _
    $region7: #{tpu_custom_call.1} parent=1 // pred_check_branch
      %18 = sbr.rel (0) target = $region9
    $region8: #{tpu_custom_call.1} parent=1 // pred_region
      _
    $region9: #{tpu_custom_call.1} parent=1 // pred_fallthru
      _
    // Predicated region
    $region10: #{tpu_custom_call.1} parent=1 // pred_check
      _
    $region11: #{tpu_custom_call.1} parent=1 // pred_check_branch
      %20 = sbr.rel (0) target = $region13
    $region12: #{tpu_custom_call.1} parent=1 // pred_region
      _
    $region13: #{tpu_custom_call.1} parent=1 // pred_fallthru
      _
    // Predicated region
    $region14: #{tpu_custom_call.1} parent=1 // pred_check
      _
    $region15: #{tpu_custom_call.1} parent=1 // pred_check_branch
      %22 = sbr.rel (0) target = $region17
    $region16: #{tpu_custom_call.1} parent=1 // pred_region
      _
    $region17: #{tpu_custom_call.1} parent=1 // pred_fallthru
      _
    // Predicated region
    $region18: #{tpu_custom_call.1} parent=1 // pred_check
      _
    $region19: #{tpu_custom_call.1} parent=1 // pred_check_branch
      %24 = sbr.rel (0) target = $region21
    $region20: #{tpu_custom_call.1} parent=1 // pred_region
      _
    $region21: #{tpu_custom_call.1} parent=1 // pred_fallthru
      _
    // Predicated region
    $region22: #{tpu_custom_call.1} parent=1 // pred_check
      _
    $region23: #{tpu_custom_call.1} parent=1 // pred_check_branch
      %26 = sbr.rel (0) target = $region25
    $region24: #{tpu_custom_call.1} parent=1 // pred_region
      _
    $region25: #{tpu_custom_call.1} parent=1 // pred_fallthru
      _
    // Predicated region
    $region26: #{tpu_custom_call.1} parent=1 // pred_check
      _
    $region27: #{tpu_custom_call.1} parent=1 // pred_check_branch
      %28 = sbr.rel (0) target = $region29
    $region28: #{tpu_custom_call.1} parent=1 // pred_region
      _
    $region29: #{tpu_custom_call.1} parent=1 // pred_fallthru
      _
    %v29 = vld [vmem:[%s1] sm:$0xff]
    %v30 = vld [vmem:[%s1 + $0x8] sm:$0x7]
    %v31 = vld [vmem:[%s0] sm:$0xff]
    %v32 = vld [vmem:[%s0 + $0x8] sm:$0xff]
    %v33 = vld [vmem:[%s0 + $0x10] sm:$0xff]
    %v34 = vld [vmem:[%s0 + $0x18] sm:$0xff]
    %v35 = vld [vmem:[%s0 + $0x20] sm:$0xff]
    %v36 = vld [vmem:[%s0 + $0x28] sm:$0xff]
    %v37 = vld [vmem:[%s0 + $0x30] sm:$0xff]
    %v38 = vld [vmem:[%s0 + $0x38] sm:$0xff]
    %v39 = vld [vmem:[%s0 + $0x40] sm:$0xff]
    %v40 = vld [vmem:[%s0 + $0x48] sm:$0xff]
    %v41 = vld [vmem:[%s0 + $0x50] sm:$0xff]
    %v42 = vld [vmem:[%s0 + $0x58] sm:$0xff]
    %v43 = vld [vmem:[%s0 + $0x60] sm:$0xff]
    %v44 = vld [vmem:[%s0 + $0x68] sm:$0xff]
    %v45 = vld [vmem:[%s0 + $0x70] sm:$0xff]
    %v46 = vld [vmem:[%s0 + $0x78] sm:$0xff]
    %vm47 = vcmask 89088
    %v49 = vsel %vm47, %v31, 0
    %v52 = vsel %vm47, %v32, 0
    %v55 = vsel %vm47, %v33, 0
    %v58 = vsel %vm47, %v34, 0
    %v61 = vsel %vm47, %v35, 0
    %v64 = vsel %vm47, %v36, 0
    %v67 = vsel %vm47, %v37, 0
    %v70 = vsel %vm47, %v38, 0
    %v73 = vsel %vm47, %v39, 0
    %v76 = vsel %vm47, %v40, 0
    %v79 = vsel %vm47, %v41, 0
    %v82 = vsel %vm47, %v42, 0
    %v85 = vsel %vm47, %v43, 0
    %v88 = vsel %vm47, %v44, 0
    %v91 = vsel %vm47, %v45, 0
    %v94 = vsel %vm47, %v46, 0
    %vm96 = vcmask 1042432
    %v98 = vsel %vm96, %v30, 0
    %100 = vmatprep.subr.mxu0 0.0
    %101 = vmatpush1.msra.mxu0 %v29
    %102 = vmatprep.subr.mxu0 0.0
    %103 = vmatpush1.msra.mxu0 %v98
    %104 = vmatprep.subr.mxu0 0.0
    %105 = vmatpush1.msra.mxu0 0.0
    %106 = vmatprep.subr.mxu0 0.0
    %107 = vmatpush1.msra.mxu0 0.0
    %108 = vmatprep.subr.mxu0 0.0
    %109 = vmatpush1.msra.mxu0 0.0
    %110 = vmatprep.subr.mxu0 0.0
    %111 = vmatpush1.msra.mxu0 0.0
    %112 = vmatprep.subr.mxu0 0.0
    %113 = vmatpush1.msra.mxu0 0.0
    %114 = vmatprep.subr.mxu0 0.0
    %115 = vmatpush1.msra.mxu0 0.0
    %116 = vmatprep.subr.mxu0 0.0
    %117 = vmatpush1.msra.mxu0 0.0
    %118 = vmatprep.subr.mxu0 0.0
    %119 = vmatpush1.msra.mxu0 0.0
    %120 = vmatprep.subr.mxu0 0.0
    %121 = vmatpush1.msra.mxu0 0.0
    %122 = vmatprep.subr.mxu0 0.0
    %123 = vmatpush1.msra.mxu0 0.0
    %124 = vmatprep.subr.mxu0 0.0
    %125 = vmatpush1.msra.mxu0 0.0
    %126 = vmatprep.subr.mxu0 0.0
    %127 = vmatpush1.msra.mxu0 0.0
    %128 = vmatprep.subr.mxu0 0.0
    %129 = vmatpush1.msra.mxu0 0.0
    %130 = vmatprep.subr.mxu0 0.0
    %131 = vmatpush1.msra.mxu0 0.0
    %132 = vmatprep.subr.mxu0 0.0
    %133 = vmatpush1.msra.mxu0 0.0
    %134 = vmatprep.subr.mxu0 0.0
    %135 = vmatpush1.msra.mxu0 0.0
    %136 = vmatprep.subr.mxu0 0.0
    %137 = vmatpush1.msra.mxu0 0.0
    %138 = vmatprep.subr.mxu0 0.0
    %139 = vmatpush1.msra.mxu0 0.0
    %140 = vmatprep.subr.mxu0 0.0
    %141 = vmatpush1.msra.mxu0 0.0
    %142 = vmatprep.subr.mxu0 0.0
    %143 = vmatpush1.msra.mxu0 0.0
    %144 = vmatprep.subr.mxu0 0.0
    %145 = vmatpush1.msra.mxu0 0.0
    %146 = vmatprep.subr.mxu0 0.0
    %147 = vmatpush1.msra.mxu0 0.0
    %148 = vmatprep.subr.mxu0 0.0
    %149 = vmatpush1.msra.mxu0 0.0
    %150 = vmatprep.subr.mxu0 0.0
    %151 = vmatpush1.msra.mxu0 0.0
    %152 = vmatprep.subr.mxu0 0.0
    %153 = vmatpush1.msra.mxu0 0.0
    %154 = vmatprep.subr.mxu0 0.0
    %155 = vmatpush1.msra.mxu0 0.0
    %156 = vmatprep.subr.mxu0 0.0
    %157 = vmatpush1.msra.mxu0 0.0
    %158 = vmatprep.subr.mxu0 0.0
    %159 = vmatpush1.msra.mxu0 0.0
    %160 = vmatprep.subr.mxu0 0.0
    %161 = vmatpush1.msra.mxu0 0.0
    %162 = vmatprep.subr.mxu0 0.0
    %163 = vmatpush1.msra.mxu0 0.0
    %164 = vmatprep.mubr.f32.mxu0 0.0
    %165 = vmatmul.mubr.f32.gmra.mrb[0].mxu0 %v49
    %v166 = vpop.f32.mrb[0].mxu0
    %v167 = vadd.f32 0.0, %v166
    %v168 = vpop.f32.mrb[0].mxu0
    %169 = vmatprep.mubr.f32.mxu0 0.0
    %170 = vmatmul.mubr.f32.gmra.mrb[0].mxu0 %v52
    %v171 = vpop.f32.mrb[0].mxu0
    %v172 = vadd.f32 0.0, %v171
    %v173 = vpop.f32.mrb[0].mxu0
    %174 = vmatprep.mubr.f32.mxu0 0.0
    %175 = vmatmul.mubr.f32.gmra.mrb[0].mxu0 %v55
    %v176 = vpop.f32.mrb[0].mxu0
    %v177 = vadd.f32 0.0, %v176
    %v178 = vpop.f32.mrb[0].mxu0
    %179 = vmatprep.mubr.f32.mxu0 0.0
    %180 = vmatmul.mubr.f32.gmra.mrb[0].mxu0 %v58
    %v181 = vpop.f32.mrb[0].mxu0
    %v182 = vadd.f32 0.0, %v181
    %v183 = vpop.f32.mrb[0].mxu0
    %184 = vmatprep.mubr.f32.mxu0 0.0
    %185 = vmatmul.mubr.f32.gmra.mrb[0].mxu0 %v61
    %v186 = vpop.f32.mrb[0].mxu0
    %v187 = vadd.f32 0.0, %v186
    %v188 = vpop.f32.mrb[0].mxu0
    %189 = vmatprep.mubr.f32.mxu0 0.0
    %190 = vmatmul.mubr.f32.gmra.mrb[0].mxu0 %v64
    %v191 = vpop.f32.mrb[0].mxu0
    %v192 = vadd.f32 0.0, %v191
    %v193 = vpop.f32.mrb[0].mxu0
    %194 = vmatprep.mubr.f32.mxu0 0.0
    %195 = vmatmul.mubr.f32.gmra.mrb[0].mxu0 %v67
    %v196 = vpop.f32.mrb[0].mxu0
    %v197 = vadd.f32 0.0, %v196
    %v198 = vpop.f32.mrb[0].mxu0
    %199 = vmatprep.mubr.f32.mxu0 0.0
    %200 = vmatmul.mubr.f32.gmra.mrb[0].mxu0 %v70
    %v201 = vpop.f32.mrb[0].mxu0
    %v202 = vadd.f32 0.0, %v201
    %v203 = vpop.f32.mrb[0].mxu0
    %204 = vmatprep.mubr.f32.mxu0 0.0
    %205 = vmatmul.mubr.f32.gmra.mrb[0].mxu0 %v73
    %v206 = vpop.f32.mrb[0].mxu0
    %v207 = vadd.f32 0.0, %v206
    %v208 = vpop.f32.mrb[0].mxu0
    %209 = vmatprep.mubr.f32.mxu0 0.0
    %210 = vmatmul.mubr.f32.gmra.mrb[0].mxu0 %v76
    %v211 = vpop.f32.mrb[0].mxu0
    %v212 = vadd.f32 0.0, %v211
    %v213 = vpop.f32.mrb[0].mxu0
    %214 = vmatprep.mubr.f32.mxu0 0.0
    %215 = vmatmul.mubr.f32.gmra.mrb[0].mxu0 %v79
    %v216 = vpop.f32.mrb[0].mxu0
    %v217 = vadd.f32 0.0, %v216
    %v218 = vpop.f32.mrb[0].mxu0
    %219 = vmatprep.mubr.f32.mxu0 0.0
    %220 = vmatmul.mubr.f32.gmra.mrb[0].mxu0 %v82
    %v221 = vpop.f32.mrb[0].mxu0
    %v222 = vadd.f32 0.0, %v221
    %v223 = vpop.f32.mrb[0].mxu0
    %224 = vmatprep.mubr.f32.mxu0 0.0
    %225 = vmatmul.mubr.f32.gmra.mrb[0].mxu0 %v85
    %v226 = vpop.f32.mrb[0].mxu0
    %v227 = vadd.f32 0.0, %v226
    %v228 = vpop.f32.mrb[0].mxu0
    %229 = vmatprep.mubr.f32.mxu0 0.0
    %230 = vmatmul.mubr.f32.gmra.mrb[0].mxu0 %v88
    %v231 = vpop.f32.mrb[0].mxu0
    %v232 = vadd.f32 0.0, %v231
    %v233 = vpop.f32.mrb[0].mxu0
    %234 = vmatprep.mubr.f32.mxu0 0.0
    %235 = vmatmul.mubr.f32.gmra.mrb[0].mxu0 %v91
    %v236 = vpop.f32.mrb[0].mxu0
    %v237 = vadd.f32 0.0, %v236
    %v238 = vpop.f32.mrb[0].mxu0
    %239 = vmatprep.mubr.f32.mxu0 0.0
    %240 = vmatmul.mubr.f32.gmra.mrb[0].mxu0 %v94
    %v241 = vpop.f32.mrb[0].mxu0
    %v242 = vadd.f32 0.0, %v241
    %v243 = vpop.f32.mrb[0].mxu0
    %244 = vdwg.mxu0
    %245 = vxpose.xlu0.b32.start [1/16] %v167, 128
    %246 = vxpose.xlu0.b32.cont [2/16] %v172, 128
    %247 = vxpose.xlu0.b32.cont [3/16] %v177, 128
    %248 = vxpose.xlu0.b32.cont [4/16] %v182, 128
    %249 = vxpose.xlu0.b32.cont [5/16] %v187, 128
    %250 = vxpose.xlu0.b32.cont [6/16] %v192, 128
    %251 = vxpose.xlu0.b32.cont [7/16] %v197, 128
    %252 = vxpose.xlu0.b32.cont [8/16] %v202, 128
    %253 = vxpose.xlu0.b32.cont [9/16] %v207, 128
    %254 = vxpose.xlu0.b32.cont [10/16] %v212, 128
    %255 = vxpose.xlu0.b32.cont [11/16] %v217, 128
    %256 = vxpose.xlu0.b32.cont [12/16] %v222, 128
    %257 = vxpose.xlu0.b32.cont [13/16] %v227, 128
    %258 = vxpose.xlu0.b32.cont [14/16] %v232, 128
    %259 = vxpose.xlu0.b32.cont [15/16] %v237, 128
    %260 = vxpose.xlu0.b32.end [16/16] %v242, 128
    %v261 = vpop.trf.xlu0
    %v262 = vpop.trf.xlu0
    %v263 = vpop.trf.xlu0
    %v264 = vpop.trf.xlu0
    %v265 = vpop.trf.xlu0
    %v266 = vpop.trf.xlu0
    %v267 = vpop.trf.xlu0
    %v268 = vpop.trf.xlu0
    %v269 = vpop.trf.xlu0
    %v270 = vpop.trf.xlu0
    %v271 = vpop.trf.xlu0
    %v272 = vpop.trf.xlu0
    %v273 = vpop.trf.xlu0
    %v274 = vpop.trf.xlu0
    %v275 = vpop.trf.xlu0
    %v276 = vpop.trf.xlu0
    %v277 = vld [vmem:[%s2] sm:$0xff]
    %v278 = vld [vmem:[%s2 + $0x8] sm:$0xff]
    %v279 = vld [vmem:[%s2 + $0x10] sm:$0xff]
    %v280 = vld [vmem:[%s2 + $0x18] sm:$0xff]
    %282 = vset.pattern.permute.xlu0 0
    %283 = vperm.xlu0 %282, %v277
    %v284 = vpop.permute.xlu0 %283
    %287 = vset.pattern.permute.xlu0 0
    %288 = vperm.xlu0 %287, %v278
    %v289 = vpop.permute.xlu0 %288
    %292 = vset.pattern.permute.xlu0 0
    %293 = vperm.xlu0 %292, %v279
    %v294 = vpop.permute.xlu0 %293
    %297 = vset.pattern.permute.xlu0 0
    %298 = vperm.xlu0 %297, %v280
    %v299 = vpop.permute.xlu0 %298
    %v301 = vadd.f32 %v261, %v284
    %v302 = vadd.f32 %v262, %v289
    %v303 = vadd.f32 %v263, %v294
    %v304 = vadd.f32 %v264, %v299
    %v305 = vld [vmem:[%s3] sm:$0xff]
    %v306 = vld [vmem:[%s3 + $0x8] sm:$0xff]
    %v307 = vld [vmem:[%s3 + $0x10] sm:$0xff]
    %v308 = vld [vmem:[%s3 + $0x18] sm:$0xff]
    %v309 = vld [vmem:[%s4] sm:$0xff]
    %v310 = vld [vmem:[%s4 + $0x8] sm:$0xff]
    %v311 = vld [vmem:[%s4 + $0x10] sm:$0xff]
    %v312 = vld [vmem:[%s4 + $0x18] sm:$0xff]
    %314 = vset.pattern.permute.xlu0 0
    %315 = vperm.xlu0 %314, %v309
    %v316 = vpop.permute.xlu0 %315
    %319 = vset.pattern.permute.xlu0 0
    %320 = vperm.xlu0 %319, %v310
    %v321 = vpop.permute.xlu0 %320
    %324 = vset.pattern.permute.xlu0 0
    %325 = vperm.xlu0 %324, %v311
    %v326 = vpop.permute.xlu0 %325
    %329 = vset.pattern.permute.xlu0 0
    %330 = vperm.xlu0 %329, %v312
    %v331 = vpop.permute.xlu0 %330
    %vm333 = vcmask 261120
    %v335 = vsel %vm333, %v305, 0
    %v338 = vsel %vm333, %v306, 0
    %v341 = vsel %vm333, %v307, 0
    %v344 = vsel %vm333, %v308, 0
    %346 = vmatprep.subr.mxu0 0.0
    %347 = vmatpush1.msra.mxu0 %v301
    %348 = vmatprep.subr.mxu0 0.0
    %349 = vmatpush1.msra.mxu0 %v302
    %350 = vmatprep.subr.mxu0 0.0
    %351 = vmatpush1.msra.mxu0 %v303
    %352 = vmatprep.subr.mxu0 0.0
    %353 = vmatpush1.msra.mxu0 %v304
    %354 = vmatprep.subr.mxu0 0.0
    %355 = vmatpush1.msra.mxu0 0.0
    %356 = vmatprep.subr.mxu0 0.0
    %357 = vmatpush1.msra.mxu0 0.0
    %358 = vmatprep.subr.mxu0 0.0
    %359 = vmatpush1.msra.mxu0 0.0
    %360 = vmatprep.subr.mxu0 0.0
    %361 = vmatpush1.msra.mxu0 0.0
    %362 = vmatprep.subr.mxu0 0.0
    %363 = vmatpush1.msra.mxu0 0.0
    %364 = vmatprep.subr.mxu0 0.0
    %365 = vmatpush1.msra.mxu0 0.0
    %366 = vmatprep.subr.mxu0 0.0
    %367 = vmatpush1.msra.mxu0 0.0
    %368 = vmatprep.subr.mxu0 0.0
    %369 = vmatpush1.msra.mxu0 0.0
    %370 = vmatprep.subr.mxu0 0.0
    %371 = vmatpush1.msra.mxu0 0.0
    %372 = vmatprep.subr.mxu0 0.0
    %373 = vmatpush1.msra.mxu0 0.0
    %374 = vmatprep.subr.mxu0 0.0
    %375 = vmatpush1.msra.mxu0 0.0
    %376 = vmatprep.subr.mxu0 0.0
    %377 = vmatpush1.msra.mxu0 0.0
    %378 = vmatprep.subr.mxu0 0.0
    %379 = vmatpush1.msra.mxu0 0.0
    %380 = vmatprep.subr.mxu0 0.0
    %381 = vmatpush1.msra.mxu0 0.0
    %382 = vmatprep.subr.mxu0 0.0
    %383 = vmatpush1.msra.mxu0 0.0
    %384 = vmatprep.subr.mxu0 0.0
    %385 = vmatpush1.msra.mxu0 0.0
    %386 = vmatprep.subr.mxu0 0.0
    %387 = vmatpush1.msra.mxu0 0.0
    %388 = vmatprep.subr.mxu0 0.0
    %389 = vmatpush1.msra.mxu0 0.0
    %390 = vmatprep.subr.mxu0 0.0
    %391 = vmatpush1.msra.mxu0 0.0
    %392 = vmatprep.subr.mxu0 0.0
    %393 = vmatpush1.msra.mxu0 0.0
    %394 = vmatprep.subr.mxu0 0.0
    %395 = vmatpush1.msra.mxu0 0.0
    %396 = vmatprep.subr.mxu0 0.0
    %397 = vmatpush1.msra.mxu0 0.0
    %398 = vmatprep.subr.mxu0 0.0
    %399 = vmatpush1.msra.mxu0 0.0
    %400 = vmatprep.subr.mxu0 0.0
    %401 = vmatpush1.msra.mxu0 0.0
    %402 = vmatprep.subr.mxu0 0.0
    %403 = vmatpush1.msra.mxu0 0.0
    %404 = vmatprep.subr.mxu0 0.0
    %405 = vmatpush1.msra.mxu0 0.0
    %406 = vmatprep.subr.mxu0 0.0
    %407 = vmatpush1.msra.mxu0 0.0
    %408 = vmatprep.subr.mxu0 0.0
    %409 = vmatpush1.msra.mxu0 0.0
    %410 = vmatprep.mubr.f32.mxu0 0.0
    %411 = vmatmul.mubr.f32.gmra.mrb[0].mxu0 %v335
    %v412 = vpop.f32.mrb[0].mxu0
    %v413 = vadd.f32 %v316, %v412
    %v414 = vpop.f32.mrb[0].mxu0
    %415 = vmatprep.mubr.f32.mxu0 0.0
    %416 = vmatmul.mubr.f32.gmra.mrb[0].mxu0 %v338
    %v417 = vpop.f32.mrb[0].mxu0
    %v418 = vadd.f32 %v321, %v417
    %v419 = vpop.f32.mrb[0].mxu0
    %420 = vmatprep.mubr.f32.mxu0 0.0
    %421 = vmatmul.mubr.f32.gmra.mrb[0].mxu0 %v341
    %v422 = vpop.f32.mrb[0].mxu0
    %v423 = vadd.f32 %v326, %v422
    %v424 = vpop.f32.mrb[0].mxu0
    %425 = vmatprep.mubr.f32.mxu0 0.0
    %426 = vmatmul.mubr.f32.gmra.mrb[0].mxu0 %v344
    %v427 = vpop.f32.mrb[0].mxu0
    %v428 = vadd.f32 %v331, %v427
    %v429 = vpop.f32.mrb[0].mxu0
    %430 = vdwg.mxu0
    %v431 = vmax.f32 %v413, 0.0
    %v432 = vmax.f32 %v418, 0.0
    %v433 = vmax.f32 %v423, 0.0
    %v434 = vmax.f32 %v428, 0.0
    %s435 = scalar_lea.vmem %s3, 32
    %v436 = vld [vmem:[%s435] sm:$0xff]
    %v437 = vld [vmem:[%s435 + $0x8] sm:$0xff]
    %v438 = vld [vmem:[%s435 + $0x10] sm:$0xff]
    %v439 = vld [vmem:[%s435 + $0x18] sm:$0xff]
    %s440 = scalar_lea.vmem %s4, 32
    %v441 = vld [vmem:[%s440] sm:$0xff]
    %v442 = vld [vmem:[%s440 + $0x8] sm:$0xff]
    %v443 = vld [vmem:[%s440 + $0x10] sm:$0xff]
    %v444 = vld [vmem:[%s440 + $0x18] sm:$0xff]
    %446 = vset.pattern.permute.xlu0 0
    %447 = vperm.xlu0 %446, %v441
    %v448 = vpop.permute.xlu0 %447
    %451 = vset.pattern.permute.xlu0 0
    %452 = vperm.xlu0 %451, %v442
    %v453 = vpop.permute.xlu0 %452
    %456 = vset.pattern.permute.xlu0 0
    %457 = vperm.xlu0 %456, %v443
    %v458 = vpop.permute.xlu0 %457
    %461 = vset.pattern.permute.xlu0 0
    %462 = vperm.xlu0 %461, %v444
    %v463 = vpop.permute.xlu0 %462
    %v466 = vsel %vm333, %v436, 0
    %v469 = vsel %vm333, %v437, 0
    %v472 = vsel %vm333, %v438, 0
    %v475 = vsel %vm333, %v439, 0
    %477 = vmatprep.subr.mxu0 0.0
    %478 = vmatpush1.msra.mxu0 %v431
    %479 = vmatprep.subr.mxu0 0.0
    %480 = vmatpush1.msra.mxu0 %v432
    %481 = vmatprep.subr.mxu0 0.0
    %482 = vmatpush1.msra.mxu0 %v433
    %483 = vmatprep.subr.mxu0 0.0
    %484 = vmatpush1.msra.mxu0 %v434
    %485 = vmatprep.subr.mxu0 0.0
    %486 = vmatpush1.msra.mxu0 0.0
    %487 = vmatprep.subr.mxu0 0.0
    %488 = vmatpush1.msra.mxu0 0.0
    %489 = vmatprep.subr.mxu0 0.0
    %490 = vmatpush1.msra.mxu0 0.0
    %491 = vmatprep.subr.mxu0 0.0
    %492 = vmatpush1.msra.mxu0 0.0
    %493 = vmatprep.subr.mxu0 0.0
    %494 = vmatpush1.msra.mxu0 0.0
    %495 = vmatprep.subr.mxu0 0.0
    %496 = vmatpush1.msra.mxu0 0.0
    %497 = vmatprep.subr.mxu0 0.0
    %498 = vmatpush1.msra.mxu0 0.0
    %499 = vmatprep.subr.mxu0 0.0
    %500 = vmatpush1.msra.mxu0 0.0
    %501 = vmatprep.subr.mxu0 0.0
    %502 = vmatpush1.msra.mxu0 0.0
    %503 = vmatprep.subr.mxu0 0.0
    %504 = vmatpush1.msra.mxu0 0.0
    %505 = vmatprep.subr.mxu0 0.0
    %506 = vmatpush1.msra.mxu0 0.0
    %507 = vmatprep.subr.mxu0 0.0
    %508 = vmatpush1.msra.mxu0 0.0
    %509 = vmatprep.subr.mxu0 0.0
    %510 = vmatpush1.msra.mxu0 0.0
    %511 = vmatprep.subr.mxu0 0.0
    %512 = vmatpush1.msra.mxu0 0.0
    %513 = vmatprep.subr.mxu0 0.0
    %514 = vmatpush1.msra.mxu0 0.0
    %515 = vmatprep.subr.mxu0 0.0
    %516 = vmatpush1.msra.mxu0 0.0
    %517 = vmatprep.subr.mxu0 0.0
    %518 = vmatpush1.msra.mxu0 0.0
    %519 = vmatprep.subr.mxu0 0.0
    %520 = vmatpush1.msra.mxu0 0.0
    %521 = vmatprep.subr.mxu0 0.0
    %522 = vmatpush1.msra.mxu0 0.0
    %523 = vmatprep.subr.mxu0 0.0
    %524 = vmatpush1.msra.mxu0 0.0
    %525 = vmatprep.subr.mxu0 0.0
    %526 = vmatpush1.msra.mxu0 0.0
    %527 = vmatprep.subr.mxu0 0.0
    %528 = vmatpush1.msra.mxu0 0.0
    %529 = vmatprep.subr.mxu0 0.0
    %530 = vmatpush1.msra.mxu0 0.0
    %531 = vmatprep.subr.mxu0 0.0
    %532 = vmatpush1.msra.mxu0 0.0
    %533 = vmatprep.subr.mxu0 0.0
    %534 = vmatpush1.msra.mxu0 0.0
    %535 = vmatprep.subr.mxu0 0.0
    %536 = vmatpush1.msra.mxu0 0.0
    %537 = vmatprep.subr.mxu0 0.0
    %538 = vmatpush1.msra.mxu0 0.0
    %539 = vmatprep.subr.mxu0 0.0
    %540 = vmatpush1.msra.mxu0 0.0
    %541 = vmatprep.mubr.f32.mxu0 0.0
    %542 = vmatmul.mubr.f32.gmra.mrb[0].mxu0 %v466
    %v543 = vpop.f32.mrb[0].mxu0
    %v544 = vadd.f32 %v448, %v543
    %v545 = vpop.f32.mrb[0].mxu0
    %546 = vmatprep.mubr.f32.mxu0 0.0
    %547 = vmatmul.mubr.f32.gmra.mrb[0].mxu0 %v469
    %v548 = vpop.f32.mrb[0].mxu0
    %v549 = vadd.f32 %v453, %v548
    %v550 = vpop.f32.mrb[0].mxu0
    %551 = vmatprep.mubr.f32.mxu0 0.0
    %552 = vmatmul.mubr.f32.gmra.mrb[0].mxu0 %v472
    %v553 = vpop.f32.mrb[0].mxu0
    %v554 = vadd.f32 %v458, %v553
    %v555 = vpop.f32.mrb[0].mxu0
    %556 = vmatprep.mubr.f32.mxu0 0.0
    %557 = vmatmul.mubr.f32.gmra.mrb[0].mxu0 %v475
    %v558 = vpop.f32.mrb[0].mxu0
    %v559 = vadd.f32 %v463, %v558
    %v560 = vpop.f32.mrb[0].mxu0
    %561 = vdwg.mxu0
    %v562 = vmax.f32 %v544, 0.0
    %v563 = vmax.f32 %v549, 0.0
    %v564 = vmax.f32 %v554, 0.0
    %v565 = vmax.f32 %v559, 0.0
    %v566 = vld [vmem:[%s5] sm:$0x1]
    %v567 = vld [vmem:[#allocation2] sm:$0x1]
    %569 = vset.pattern.permute.xlu0 0
    %570 = vperm.xlu0 %569, %v567
    %v571 = vpop.permute.xlu0 %570
    %v573 = vlaneseq
    %v574 = vshrl.u32 %v573, 7
    %v575 = vsub.s32 0, %v574
    %v576 = vrot.slane %v571, %v575
    %v578 = vsel %vm333, %v566, 0
    %580 = vmatprep.subr.mxu0 0.0
    %581 = vmatpush1.msra.mxu0 %v562
    %582 = vmatprep.subr.mxu0 0.0
    %583 = vmatpush1.msra.mxu0 %v563
    %584 = vmatprep.subr.mxu0 0.0
    %585 = vmatpush1.msra.mxu0 %v564
    %586 = vmatprep.subr.mxu0 0.0
    %587 = vmatpush1.msra.mxu0 %v565
    %588 = vmatprep.subr.mxu0 0.0
    %589 = vmatpush1.msra.mxu0 0.0
    %590 = vmatprep.subr.mxu0 0.0
    %591 = vmatpush1.msra.mxu0 0.0
    %592 = vmatprep.subr.mxu0 0.0
    %593 = vmatpush1.msra.mxu0 0.0
    %594 = vmatprep.subr.mxu0 0.0
    %595 = vmatpush1.msra.mxu0 0.0
    %596 = vmatprep.subr.mxu0 0.0
    %597 = vmatpush1.msra.mxu0 0.0
    %598 = vmatprep.subr.mxu0 0.0
    %599 = vmatpush1.msra.mxu0 0.0
    %600 = vmatprep.subr.mxu0 0.0
    %601 = vmatpush1.msra.mxu0 0.0
    %602 = vmatprep.subr.mxu0 0.0
    %603 = vmatpush1.msra.mxu0 0.0
    %604 = vmatprep.subr.mxu0 0.0
    %605 = vmatpush1.msra.mxu0 0.0
    %606 = vmatprep.subr.mxu0 0.0
    %607 = vmatpush1.msra.mxu0 0.0
    %608 = vmatprep.subr.mxu0 0.0
    %609 = vmatpush1.msra.mxu0 0.0
    %610 = vmatprep.subr.mxu0 0.0
    %611 = vmatpush1.msra.mxu0 0.0
    %612 = vmatprep.subr.mxu0 0.0
    %613 = vmatpush1.msra.mxu0 0.0
    %614 = vmatprep.subr.mxu0 0.0
    %615 = vmatpush1.msra.mxu0 0.0
    %616 = vmatprep.subr.mxu0 0.0
    %617 = vmatpush1.msra.mxu0 0.0
    %618 = vmatprep.subr.mxu0 0.0
    %619 = vmatpush1.msra.mxu0 0.0
    %620 = vmatprep.subr.mxu0 0.0
    %621 = vmatpush1.msra.mxu0 0.0
    %622 = vmatprep.subr.mxu0 0.0
    %623 = vmatpush1.msra.mxu0 0.0
    %624 = vmatprep.subr.mxu0 0.0
    %625 = vmatpush1.msra.mxu0 0.0
    %626 = vmatprep.subr.mxu0 0.0
    %627 = vmatpush1.msra.mxu0 0.0
    %628 = vmatprep.subr.mxu0 0.0
    %629 = vmatpush1.msra.mxu0 0.0
    %630 = vmatprep.subr.mxu0 0.0
    %631 = vmatpush1.msra.mxu0 0.0
    %632 = vmatprep.subr.mxu0 0.0
    %633 = vmatpush1.msra.mxu0 0.0
    %634 = vmatprep.subr.mxu0 0.0
    %635 = vmatpush1.msra.mxu0 0.0
    %636 = vmatprep.subr.mxu0 0.0
    %637 = vmatpush1.msra.mxu0 0.0
    %638 = vmatprep.subr.mxu0 0.0
    %639 = vmatpush1.msra.mxu0 0.0
    %640 = vmatprep.subr.mxu0 0.0
    %641 = vmatpush1.msra.mxu0 0.0
    %642 = vmatprep.subr.mxu0 0.0
    %643 = vmatpush1.msra.mxu0 0.0
    %644 = vmatprep.mubr.f32.mxu0 0.0
    %645 = vmatmul.mubr.f32.gmra.mrb[0].mxu0 %v578
    %v646 = vpop.f32.mrb[0].mxu0
    %v647 = vadd.f32 %v576, %v646
    %v648 = vpop.f32.mrb[0].mxu0
    %649 = vdwg.mxu0
    %650 = vst [vmem:[#allocation3] sm:$0x1] %v647
    // Predicated region
    $region30: #{tpu_custom_call.1} parent=1 // pred_check
      _
    $region31: #{tpu_custom_call.1} parent=1 // pred_check_branch
      %652 = sbr.rel (0) target = $region33
    $region32: #{tpu_custom_call.1} parent=1 // pred_region
      %s654 = ssub.s32 16, 16
      %655 = vsyncadd [#allocation4], %s654
      %s657 = sshll.u32 [#allocation3], 4
      %s658 = int_to_ptr.vmem [resolvable:$true] %s657
      %660 = dma.vmem_to_hbm [thread:$0]  %s658, 16, %s7, [#allocation4]
    $region33: #{tpu_custom_call.1} parent=1 // pred_fallthru
      _
    // Predicated region
    $region34: #{tpu_custom_call.1} parent=1 // pred_check
      _
    $region35: #{tpu_custom_call.1} parent=1 // pred_check_branch
      %662 = sbr.rel (0) target = $region37
    $region36: #{tpu_custom_call.1} parent=1 // pred_region
      %663 = dma.done [#allocation4], 16
    $region37: #{tpu_custom_call.1} parent=1 // pred_fallthru
      _
    %664 = vsyncpa [#allocation4], 1

</llo_original>
